<compile_context>
chip_gen: v5e
topology: v5e:2x2
jax: 0.10.0
libtpu: 0.0.40
codegen_flags: <defaults>
</compile_context>

<pallas_src>
import jax
import jax.numpy as jnp
from jax import lax
from jax.experimental import pallas as pl
from jax.experimental.pallas import tpu as pltpu


def _round_up(n, m):
    return ((n + m - 1) // m) * m


def reward_net_kernel(x_ref, w1_ref, b1_ref, w2_ref, b2_ref, out_ref):
    """One batch tile of y = relu(x @ W1 + b1) @ W2^T + b2.

    x_ref  : (TB, F)    VMEM  input batch tile (feature on lanes)
    w1_ref : (F, H)     VMEM  fc1 weight, stored transposed vs. torch
    b1_ref : (1, H)     VMEM  fc1 bias
    w2_ref : (1, H)     VMEM  fc3 weight (torch layout: (out=1, in=H))
    b2_ref : (1,)       SMEM  fc3 bias (scalar)
    out_ref: (1, 1, TB) VMEM  lane-dense output row (batch on the lane axis)
    """
    x = x_ref[...]

    # fc1 + ReLU: (TB, F) @ (F, H) -> (TB, H) on the MXU, f32 accumulation.
    h = jnp.dot(x, w1_ref[...], preferred_element_type=jnp.float32)
    h = jnp.maximum(h + b1_ref[...], 0.0)

    # fc3: contract H of (1, H) with H of (TB, H) -> (1, TB).  This produces
    # the result directly with batch on the lane axis, so the store below is
    # a full-width unmasked vst instead of a (TB, 1) masked-column store.
    y = lax.dot_general(
        w2_ref[...], h,
        dimension_numbers=(((1,), (1,)), ((), ())),
        preferred_element_type=jnp.float32)              # (1, TB)
    y = y + b2_ref[0]

    out_ref[...] = y.reshape(out_ref.shape).astype(out_ref.dtype)


def reward_net_forward(x, w1, b1, w2, b2, *, batch_tile=2048):
    """x: (B, F) float32.  Params (torch-compatible):
         w1: (F, H) = fc1.weight.T,  b1: (H,),
         w2: (1, H) = fc3.weight,    b2: (1,) = fc3.bias.
       Returns (B, 1) float32."""
    B, F = x.shape
    H = w1.shape[1]

    # Tile the batch.  Keep the tile a multiple of 128 so the per-tile output
    # row (1, TB) is lane-dense; pad the batch with zero rows up to a whole
    # number of tiles (padded rows are sliced off below).
    # NOTE: sweep batch_tile per generation (1024-8192 is a good range, well
    # inside every generation's scoped-VMEM default at F=32/H=50); on v7x
    # keep >= 4 grid steps for very large batches so both TensorCores get
    # work and DMA stays double-buffered.
    bt = min(_round_up(batch_tile, 128), _round_up(B, 128))
    num_tiles = pl.cdiv(B, bt)
    b_pad = num_tiles * bt
    if b_pad != B:
        x = jnp.pad(x, ((0, b_pad - B), (0, 0)))

    out = pl.pallas_call(
        reward_net_kernel,
        out_shape=jax.ShapeDtypeStruct((num_tiles, 1, bt), jnp.float32),
        grid_spec=pl.GridSpec(
            grid=(num_tiles,),
            in_specs=[
                # batch-tiled input: (bt, F) per grid step
                pl.BlockSpec((bt, F), lambda i: (i, 0)),
                # weights / biases: full arrays, same block every step
                pl.BlockSpec((F, H), lambda i: (0, 0)),
                pl.BlockSpec((1, H), lambda i: (0, 0)),
                pl.BlockSpec((1, H), lambda i: (0, 0)),
                # scalar fc3 bias lives in SMEM (no padded VMEM tile)
                pl.BlockSpec(memory_space=pltpu.MemorySpace.SMEM),
            ],
            # lane-dense output slab: one (1, bt) row per grid step
            out_specs=pl.BlockSpec((1, 1, bt), lambda i: (i, 0, 0)),
        ),
        compiler_params=pltpu.CompilerParams(
            dimension_semantics=("parallel",),
        ),
    )(x, w1, b1.reshape(1, H), w2, b2)

    # (num_tiles, 1, bt) -> (B, 1); drop padded rows.
    return out.reshape(-1)[:B].reshape(B, 1)


def init_params(key, feat_dim, hidden):
    """Deterministic synthetic parameters matching the nn.Linear layers."""
    k1, k2, k3, k4 = jax.random.split(key, 4)
    # torch fc1.weight is (H, F); we store the transpose (F, H).
    w1 = jax.random.normal(k1, (feat_dim, hidden), jnp.float32) * 0.1
    b1 = jax.random.normal(k2, (hidden,), jnp.float32) * 0.1
    # torch fc3.weight is (1, H); used as-is.
    w2 = jax.random.normal(k3, (1, hidden), jnp.float32) * 0.1
    b2 = jax.random.normal(k4, (1,), jnp.float32) * 0.1
    return w1, b1, w2, b2


if __name__ == "__main__":
    feat_dim = 32
    hidden = 50          # module default
    batch = 300          # deliberately ragged: exercises cdiv + zero padding

    key = jax.random.PRNGKey(0)
    kx, kp = jax.random.split(key)
    x = jax.random.normal(kx, (batch, feat_dim), jnp.float32)
    w1, b1, w2, b2 = init_params(kp, feat_dim, hidden)

    # Small batch_tile here just to exercise a multi-step grid in the demo;
    # the production default is 2048.
    out = reward_net_forward(x, w1, b1, w2, b2, batch_tile=128)
    out = jax.block_until_ready(out)

    # reference: relu(x @ W1 + b1) @ W2^T + b2 (same math as the torch module)
    ref = jnp.maximum(x @ w1 + b1, 0.0) @ w2.T + b2
    assert out.shape == (batch, 1)
    assert jnp.allclose(out, ref, atol=1e-5, rtol=1e-5), float(
        jnp.max(jnp.abs(out - ref)))

    print("KERNEL_OK")
</pallas_src>

<mosaic_0001>
module attributes {stable_mosaic.version = 11 : i64} {
  func.func @reward_net_kernel(%arg0: i32, %arg1: memref<128x32xf32, #tpu.memory_space<vmem>>, %arg2: memref<32x50xf32, #tpu.memory_space<vmem>>, %arg3: memref<1x50xf32, #tpu.memory_space<vmem>>, %arg4: memref<1x50xf32, #tpu.memory_space<vmem>>, %arg5: memref<1xf32, #tpu.memory_space<smem>>, %arg6: memref<1x1x128xf32, #tpu.memory_space<vmem>>) attributes {dimension_semantics = [#tpu.dimension_semantics<parallel>], iteration_bounds = array<i64: 3>, scalar_prefetch = 0 : i64, scratch_operands = 0 : i64, tpu.core_type = #tpu.core_type<tc>, window_params = [{transform_indices = @transform_0, window_bounds = array<i64: 128, 32>}, {pipeline_mode = #tpu.pipeline_mode<synchronous>, transform_indices = @transform_1, window_bounds = array<i64: 32, 50>}, {pipeline_mode = #tpu.pipeline_mode<synchronous>, transform_indices = @transform_2, window_bounds = array<i64: 1, 50>}, {pipeline_mode = #tpu.pipeline_mode<synchronous>, transform_indices = @transform_3, window_bounds = array<i64: 1, 50>}, {transform_indices = @transform_4, window_bounds = array<i64: 1>}, {transform_indices = @transform_5, window_bounds = array<i64: 1, 1, 128>}]} {
    %c0 = arith.constant 0 : index
    %c0_0 = arith.constant 0 : index
    %0 = vector.load %arg1[%c0, %c0_0] : memref<128x32xf32, #tpu.memory_space<vmem>>, vector<128x32xf32>
    %c0_1 = arith.constant 0 : index
    %c0_2 = arith.constant 0 : index
    %1 = vector.load %arg2[%c0_1, %c0_2] : memref<32x50xf32, #tpu.memory_space<vmem>>, vector<32x50xf32>
    %cst = arith.constant dense<0.000000e+00> : vector<128x50xf32>
    %2 = tpu.matmul %0, %1, %cst {dimension_numbers = #tpu.dot_dimension_numbers<[1], [0], [0], [1], [0, 0, 1, 1], [], []>} : vector<128x32xf32>, vector<32x50xf32>, vector<128x50xf32> -> vector<128x50xf32>
    %c0_3 = arith.constant 0 : index
    %c0_4 = arith.constant 0 : index
    %3 = vector.load %arg3[%c0_3, %c0_4] : memref<1x50xf32, #tpu.memory_space<vmem>>, vector<1x50xf32>
    %4 = vector.broadcast %3 : vector<1x50xf32> to vector<128x50xf32>
    %5 = arith.addf %2, %4 : vector<128x50xf32>
    %cst_5 = arith.constant 0.000000e+00 : f32
    %6 = vector.broadcast %cst_5 : f32 to vector<128x50xf32>
    %7 = arith.maximumf %5, %6 : vector<128x50xf32>
    %c0_6 = arith.constant 0 : index
    %c0_7 = arith.constant 0 : index
    %8 = vector.load %arg4[%c0_6, %c0_7] : memref<1x50xf32, #tpu.memory_space<vmem>>, vector<1x50xf32>
    %cst_8 = arith.constant dense<0.000000e+00> : vector<1x128xf32>
    %9 = tpu.matmul %8, %7, %cst_8 {dimension_numbers = #tpu.dot_dimension_numbers<[1], [1], [0], [0], [0, 0, 1, 0], [], []>} : vector<1x50xf32>, vector<128x50xf32>, vector<1x128xf32> -> vector<1x128xf32>
    %c0_9 = arith.constant 0 : index
    %10 = memref.load %arg5[%c0_9] : memref<1xf32, #tpu.memory_space<smem>>
    %11 = vector.broadcast %10 : f32 to vector<1x128xf32>
    %12 = arith.addf %9, %11 : vector<1x128xf32>
    %13 = vector.shape_cast %12 : vector<1x128xf32> to vector<1x1x128xf32>
    %c0_10 = arith.constant 0 : index
    %c0_11 = arith.constant 0 : index
    %c0_12 = arith.constant 0 : index
    %14 = vector.load %arg6[%c0_10, %c0_11, %c0_12] : memref<1x1x128xf32, #tpu.memory_space<vmem>>, vector<1x1x128xf32>
    tpu.vector_store %arg6[%c0_10, %c0_11, %c0_12], %13 {strides = array<i32>} : memref<1x1x128xf32, #tpu.memory_space<vmem>>, vector<1x1x128xf32>,
    return
  }
  func.func @transform_0(%arg0: i32) -> (i32, i32) {
    %c0_i32 = arith.constant 0 : i32
    %c0_i32_0 = arith.constant 0 : i32
    return %arg0, %c0_i32 : i32, i32
  }
  func.func @transform_1(%arg0: i32) -> (i32, i32) {
    %c0_i32 = arith.constant 0 : i32
    %c0_i32_0 = arith.constant 0 : i32
    %c0_i32_1 = arith.constant 0 : i32
    return %c0_i32, %c0_i32_0 : i32, i32
  }
  func.func @transform_2(%arg0: i32) -> (i32, i32) {
    %c0_i32 = arith.constant 0 : i32
    %c0_i32_0 = arith.constant 0 : i32
    %c0_i32_1 = arith.constant 0 : i32
    return %c0_i32, %c0_i32_0 : i32, i32
  }
  func.func @transform_3(%arg0: i32) -> (i32, i32) {
    %c0_i32 = arith.constant 0 : i32
    %c0_i32_0 = arith.constant 0 : i32
    %c0_i32_1 = arith.constant 0 : i32
    return %c0_i32, %c0_i32_0 : i32, i32
  }
  func.func @transform_4(%arg0: i32) -> i32 {
    %c0_i32 = arith.constant 0 : i32
    %c0_i32_0 = arith.constant 0 : i32
    return %c0_i32 : i32
  }
  func.func @transform_5(%arg0: i32) -> (i32, i32, i32) {
    %c0_i32 = arith.constant 0 : i32
    %c0_i32_0 = arith.constant 0 : i32
    %c0_i32_1 = arith.constant 0 : i32
    return %arg0, %c0_i32, %c0_i32_0 : i32, i32, i32
  }
}

</mosaic_0001>

<llo_original>
// kernel: tpu_custom_call.1
$region0: #{tpu_custom_call.1}
  #allocation0 [shape = 'u32[]', space=smem, size = 0x4, offset = 0x4, fixed_abs, tag = 'smem constant byte address 0x4 - core index']
  #allocation1 [shape = 'u32[72,128]{1,0:T(1,128)}', space=vmem, size = 0x9000, scoped, tag = 'internal scratch']
  #allocation2 [shape = 'f32[1]{0:T(128)S(6)}', space=smem, size = 0x200, scoped, tag = 'scoped memory for tpu_custom_call.1']
  %s0 = inlined_call_operand.vmem [shape: f32[384,32], index: 0, kind: input, shape index: {}]
  %s1 = inlined_call_operand.vmem [shape: f32[32,50], index: 1, kind: input, shape index: {}]
  %s2 = inlined_call_operand.vmem [shape: f32[1,50], index: 2, kind: input, shape index: {}]
  %s3 = inlined_call_operand.vmem [shape: f32[1,50], index: 3, kind: input, shape index: {}]
  %s4 = inlined_call_operand.<no memory space> [shape: f32[1], index: 4, kind: input, shape index: {}]
  %s5 = inlined_call_operand.hbm [shape: f32[3,1,128], index: 5, kind: output, shape index: {}]
  %s6 = sld [smem:[#allocation0]]
  $region53: #{tpu_custom_call.1} parent=0
    _
  %s8 = ssub.s32 1, %s6
  %s9 = scalar_select 0, %s8, %s6
  %10 = sst [smem:[#allocation2]] %s4
  $region1: #{tpu_custom_call.1} parent=0
    #allocation3 [shape = 'u8[1024]{0}', space=vmem, size = 0x400, scoped, tag = 'output window, operand 0']
    #allocation4 [shape = 's32[2]{0}', space=sflag, size = 0x8, scoped, tag = 'scoped memory for tpu_custom_call.1']
    %11 = vsyncpa [#allocation4], 0
    %s12 = scalar_lea.sflag [#allocation4], 1
    %13 = vsyncpa %s12, 0
    loop: start=0, step=1, limit=5
    $region2: #{tpu_custom_call.1} parent=1 // loop_pre_header
      _
    $region3: #{tpu_custom_call.1} parent=1 // loop_header
      %s15 = sphi 0, %s19
      %p16 = scmp.ge.s32.totalorder %s15, 5
      %s25 = sphi 0, %s27
      %s28 = sphi 0, %s25
      %s29 = sphi 0, %s28
      %s45 = sphi 0, %s29
      %s49 = sphi 0, %s49
      %s51 = sphi 0, %s49
      %s52 = sphi 0, %s51
      %s66 = sphi 0, %s52
      %s70 = sphi 0, %s70
      %s72 = sphi 0, %s70
      %s73 = sphi 0, %s72
      %s87 = sphi 0, %s73
      %s91 = sphi 0, %s91
      %s93 = sphi 0, %s91
      %s94 = sphi 0, %s93
      %s108 = sphi 0, %s94
      %s112 = sphi 0, %s112
      %s114 = sphi 0, %s112
      %s115 = sphi 0, %s114
      %s129 = sphi 0, %s115
      %s135 = sphi 0, %s137
      %s138 = sphi 0, %s135
      %s139 = sphi 0, %s138
      %s155 = sphi 0, %s139
    $region4: #{tpu_custom_call.1} parent=1 // loop_header_branch
      %18 = sbr.rel (%p16) target = $region8
    $region5: #{tpu_custom_call.1} parent=1 // loop_body
      %s20 = ssub.s32 %s15, 1
      %s21 = ssub.s32 %s15, 2
      %s22 = sadd.s32 %s15, 1
      %s23 = ssub.s32 %s15, %s22
      %p24 = scmp.eq.s32.totalorder %s23, 0
      %s26 = sadd.s32 %s25, 1
      %s27 = scalar_select %p24, %s25, %s26
      %p30 = pneg %p24
      %p31 = scmp.eq.s32.totalorder %s15, 2
      %p32 = por %p30, %p31
      %p33 = scmp.ne.s32.totalorder %s25, %s28
      %p34 = scmp.eq.s32.totalorder %s15, 0
      %p35 = por %p33, %p34
      %p36 = scmp.ne.s32.totalorder %s25, %s28
      %p37 = scmp.eq.s32.totalorder %s20, 2
      %p38 = por %p36, %p37
      %p39 = scmp.ne.s32.totalorder %s28, %s29
      %p40 = scmp.eq.s32.totalorder %s20, 0
      %p41 = por %p39, %p40
      %p42 = scmp.ne.s32.totalorder %s28, %s29
      %p43 = scmp.eq.s32.totalorder %s21, 2
      %p44 = por %p42, %p43
      %p46 = scmp.ne.s32.totalorder %s29, %s45
      %p47 = scmp.eq.s32.totalorder %s21, 0
      %p48 = por %p46, %p47
      %s50 = sadd.s32 %s49, 1
      %p53 = scmp.eq.s32.totalorder %s15, 2
      %p54 = scmp.ne.s32.totalorder %s49, %s51
      %p55 = scmp.eq.s32.totalorder %s15, 0
      %p56 = por %p54, %p55
      %p57 = scmp.ne.s32.totalorder %s49, %s51
      %p58 = scmp.eq.s32.totalorder %s20, 2
      %p59 = por %p57, %p58
      %p60 = scmp.ne.s32.totalorder %s51, %s52
      %p61 = scmp.eq.s32.totalorder %s20, 0
      %p62 = por %p60, %p61
      %p63 = scmp.ne.s32.totalorder %s51, %s52
      %p64 = scmp.eq.s32.totalorder %s21, 2
      %p65 = por %p63, %p64
      %p67 = scmp.ne.s32.totalorder %s52, %s66
      %p68 = scmp.eq.s32.totalorder %s21, 0
      %p69 = por %p67, %p68
      %s71 = sadd.s32 %s70, 1
      %p74 = scmp.eq.s32.totalorder %s15, 2
      %p75 = scmp.ne.s32.totalorder %s70, %s72
      %p76 = scmp.eq.s32.totalorder %s15, 0
      %p77 = por %p75, %p76
      %p78 = scmp.ne.s32.totalorder %s70, %s72
      %p79 = scmp.eq.s32.totalorder %s20, 2
      %p80 = por %p78, %p79
      %p81 = scmp.ne.s32.totalorder %s72, %s73
      %p82 = scmp.eq.s32.totalorder %s20, 0
      %p83 = por %p81, %p82
      %p84 = scmp.ne.s32.totalorder %s72, %s73
      %p85 = scmp.eq.s32.totalorder %s21, 2
      %p86 = por %p84, %p85
      %p88 = scmp.ne.s32.totalorder %s73, %s87
      %p89 = scmp.eq.s32.totalorder %s21, 0
      %p90 = por %p88, %p89
      %s92 = sadd.s32 %s91, 1
      %p95 = scmp.eq.s32.totalorder %s15, 2
      %p96 = scmp.ne.s32.totalorder %s91, %s93
      %p97 = scmp.eq.s32.totalorder %s15, 0
      %p98 = por %p96, %p97
      %p99 = scmp.ne.s32.totalorder %s91, %s93
      %p100 = scmp.eq.s32.totalorder %s20, 2
      %p101 = por %p99, %p100
      %p102 = scmp.ne.s32.totalorder %s93, %s94
      %p103 = scmp.eq.s32.totalorder %s20, 0
      %p104 = por %p102, %p103
      %p105 = scmp.ne.s32.totalorder %s93, %s94
      %p106 = scmp.eq.s32.totalorder %s21, 2
      %p107 = por %p105, %p106
      %p109 = scmp.ne.s32.totalorder %s94, %s108
      %p110 = scmp.eq.s32.totalorder %s21, 0
      %p111 = por %p109, %p110
      %s113 = sadd.s32 %s112, 1
      %p116 = scmp.eq.s32.totalorder %s15, 2
      %p117 = scmp.ne.s32.totalorder %s112, %s114
      %p118 = scmp.eq.s32.totalorder %s15, 0
      %p119 = por %p117, %p118
      %p120 = scmp.ne.s32.totalorder %s112, %s114
      %p121 = scmp.eq.s32.totalorder %s20, 2
      %p122 = por %p120, %p121
      %p123 = scmp.ne.s32.totalorder %s114, %s115
      %p124 = scmp.eq.s32.totalorder %s20, 0
      %p125 = por %p123, %p124
      %p126 = scmp.ne.s32.totalorder %s114, %s115
      %p127 = scmp.eq.s32.totalorder %s21, 2
      %p128 = por %p126, %p127
      %p130 = scmp.ne.s32.totalorder %s115, %s129
      %p131 = scmp.eq.s32.totalorder %s21, 0
      %p132 = por %p130, %p131
      %s133 = ssub.s32 %s15, %s22
      %p134 = scmp.eq.s32.totalorder %s133, 0
      %s136 = sadd.s32 %s135, 1
      %s137 = scalar_select %p134, %s135, %s136
      %p140 = pneg %p134
      %p141 = scmp.eq.s32.totalorder %s15, 2
      %p142 = por %p140, %p141
      %p143 = scmp.ne.s32.totalorder %s135, %s138
      %p144 = scmp.eq.s32.totalorder %s15, 0
      %p145 = por %p143, %p144
      %p146 = scmp.ne.s32.totalorder %s135, %s138
      %p147 = scmp.eq.s32.totalorder %s20, 2
      %p148 = por %p146, %p147
      %p149 = scmp.ne.s32.totalorder %s138, %s139
      %p150 = scmp.eq.s32.totalorder %s20, 0
      %p151 = por %p149, %p150
      %p152 = scmp.ne.s32.totalorder %s138, %s139
      %p153 = scmp.eq.s32.totalorder %s21, 2
      %p154 = por %p152, %p153
      %p156 = scmp.ne.s32.totalorder %s139, %s155
      %p157 = scmp.eq.s32.totalorder %s21, 0
      %p158 = por %p156, %p157
      %p159 = scmp.le.s32.totalorder 1, %s15
      %p160 = scmp.lt.s32.totalorder %s15, 4
      %p161 = pnand %p159, %p160
      %p162 = pneg %p161
      // Predicated region
      $region9: #{tpu_custom_call.1} parent=5 // pred_check
        _
      $region10: #{tpu_custom_call.1} parent=5 // pred_check_branch
        %164 = sbr.rel (%p161) target = $region12
      $region11: #{tpu_custom_call.1} parent=5 // pred_region
        %s165 = ssub.s32 %s15, 1
        // Predicated region
        $region13: #{tpu_custom_call.1} parent=11 // pred_check
          %p166 = pneg %p62
        $region14: #{tpu_custom_call.1} parent=11 // pred_check_branch
          %168 = sbr.rel (%p166) target = $region16
        $region15: #{tpu_custom_call.1} parent=11 // pred_region
          _
        $region16: #{tpu_custom_call.1} parent=11 // pred_fallthru
          _
        // Predicated region
        $region17: #{tpu_custom_call.1} parent=11 // pred_check
          %p169 = pneg %p83
        $region18: #{tpu_custom_call.1} parent=11 // pred_check_branch
          %171 = sbr.rel (%p169) target = $region20
        $region19: #{tpu_custom_call.1} parent=11 // pred_region
          _
        $region20: #{tpu_custom_call.1} parent=11 // pred_fallthru
          _
        // Predicated region
        $region21: #{tpu_custom_call.1} parent=11 // pred_check
          %p172 = pneg %p104
        $region22: #{tpu_custom_call.1} parent=11 // pred_check_branch
          %174 = sbr.rel (%p172) target = $region24
        $region23: #{tpu_custom_call.1} parent=11 // pred_region
          _
        $region24: #{tpu_custom_call.1} parent=11 // pred_fallthru
          _
        // Predicated region
        $region25: #{tpu_custom_call.1} parent=11 // pred_check
          %p175 = pneg %p125
        $region26: #{tpu_custom_call.1} parent=11 // pred_check_branch
          %177 = sbr.rel (%p175) target = $region28
        $region27: #{tpu_custom_call.1} parent=11 // pred_region
          _
        $region28: #{tpu_custom_call.1} parent=11 // pred_fallthru
          _
      $region12: #{tpu_custom_call.1} parent=5 // pred_fallthru
        _
      %p178 = scmp.lt.s32.totalorder %s15, 3
      // Predicated region
      $region29: #{tpu_custom_call.1} parent=5 // pred_check
        %p179 = pneg %p178
      $region30: #{tpu_custom_call.1} parent=5 // pred_check_branch
        %181 = sbr.rel (%p179) target = $region32
      $region31: #{tpu_custom_call.1} parent=5 // pred_region
        // Predicated region
        $region33: #{tpu_custom_call.1} parent=31 // pred_check
          %p182 = pneg %p35
        $region34: #{tpu_custom_call.1} parent=31 // pred_check_branch
          %184 = sbr.rel (%p182) target = $region36
        $region35: #{tpu_custom_call.1} parent=31 // pred_region
          %s185 = smul.u32 16, %s15
          %p186 = scmp.lt.s32.totalorder %s185, 47
          %s187 = scalar_select %p186, %s185, 47
          %s188 = smul.addr %s187, 8
          %s189 = scalar_lea.vmem %s0, %s188
          %s190 = smul.u32 16, %s15
        $region36: #{tpu_custom_call.1} parent=31 // pred_fallthru
          _
      $region32: #{tpu_custom_call.1} parent=5 // pred_fallthru
        _
      %p191 = scmp.le.s32.totalorder 1, %s15
      %p192 = scmp.lt.s32.totalorder %s15, 4
      %p193 = pnand %p191, %p192
      %p194 = pneg %p193
      // Predicated region
      $region37: #{tpu_custom_call.1} parent=5 // pred_check
        _
      $region38: #{tpu_custom_call.1} parent=5 // pred_check_branch
        %196 = sbr.rel (%p193) target = $region40
      $region39: #{tpu_custom_call.1} parent=5 // pred_region
        %s197 = ssub.s32 %s15, 1
        %s198 = smul.u32 16, %s20
        %p199 = scmp.lt.s32.totalorder %s198, 47
        %s200 = scalar_select %p199, %s198, 47
        %s201 = smul.addr %s200, 8
        %s202 = scalar_lea.vmem %s0, %s201
        %p203 = pneg %p41
        %p204 = pneg %p38
        %p205 = pneg %p62
        %p206 = pneg %p59
        %p207 = pneg %p83
        %p208 = pneg %p80
        %p209 = pneg %p104
        %p210 = pneg %p101
        %p211 = pneg %p125
        %p212 = pneg %p122
        %p213 = pneg %p151
        %p214 = pneg %p148
        %s215 = sand.u32 %s138, 1
        %s216 = scalar_lea.sflag [#allocation4], %s215
        %s217 = sand.u32 %s138, 1
        %s218 = scalar_lea.vmem [#allocation3], %s217
        %s219 = smul.u32 16, %s20
        %p220 = scmp.lt.s32.totalorder %s219, 47
        %s221 = scalar_select %p220, %s219, 47
        %s222 = smul.addr %s221, 8
        %s223 = scalar_lea.vmem %s0, %s222
        %s224 = smul.u32 16, %s20
        %v225 = vld [vmem:[%s223] sm:$0xff]
        %v226 = vld [vmem:[%s223 + $0x8] sm:$0xff]
        %v227 = vld [vmem:[%s223 + $0x10] sm:$0xff]
        %v228 = vld [vmem:[%s223 + $0x18] sm:$0xff]
        %v229 = vld [vmem:[%s223 + $0x20] sm:$0xff]
        %v230 = vld [vmem:[%s223 + $0x28] sm:$0xff]
        %v231 = vld [vmem:[%s223 + $0x30] sm:$0xff]
        %v232 = vld [vmem:[%s223 + $0x38] sm:$0xff]
        %v233 = vld [vmem:[%s223 + $0x40] sm:$0xff]
        %v234 = vld [vmem:[%s223 + $0x48] sm:$0xff]
        %v235 = vld [vmem:[%s223 + $0x50] sm:$0xff]
        %v236 = vld [vmem:[%s223 + $0x58] sm:$0xff]
        %v237 = vld [vmem:[%s223 + $0x60] sm:$0xff]
        %v238 = vld [vmem:[%s223 + $0x68] sm:$0xff]
        %v239 = vld [vmem:[%s223 + $0x70] sm:$0xff]
        %v240 = vld [vmem:[%s223 + $0x78] sm:$0xff]
        %v241 = vld [vmem:[%s1] sm:$0xff]
        %v242 = vld [vmem:[%s1 + $0x8] sm:$0xff]
        %v243 = vld [vmem:[%s1 + $0x10] sm:$0xff]
        %v244 = vld [vmem:[%s1 + $0x18] sm:$0xff]
        %v245 = vld [vmem:[%s2] sm:$0x1]
        %v247 = vperm.slane %v245, 0
        %vm249 = vcmask 261120
        %v251 = vsel %vm249, %v225, 0
        %v254 = vsel %vm249, %v226, 0
        %v257 = vsel %vm249, %v227, 0
        %v260 = vsel %vm249, %v228, 0
        %v263 = vsel %vm249, %v229, 0
        %v266 = vsel %vm249, %v230, 0
        %v269 = vsel %vm249, %v231, 0
        %v272 = vsel %vm249, %v232, 0
        %v275 = vsel %vm249, %v233, 0
        %v278 = vsel %vm249, %v234, 0
        %v281 = vsel %vm249, %v235, 0
        %v284 = vsel %vm249, %v236, 0
        %v287 = vsel %vm249, %v237, 0
        %v290 = vsel %vm249, %v238, 0
        %v293 = vsel %vm249, %v239, 0
        %v296 = vsel %vm249, %v240, 0
        %298 = vmatpush.msra.mxu0 0.0
        %299 = vmatpush.msra.mxu0 0.0
        %300 = vmatpush.msra.mxu0 0.0
        %301 = vmatpush.msra.mxu0 0.0
        %302 = vmatpush.msra.mxu0 0.0
        %303 = vmatpush.msra.mxu0 0.0
        %304 = vmatpush.msra.mxu0 0.0
        %305 = vmatpush.msra.mxu0 0.0
        %306 = vmatpush.msra.mxu0 0.0
        %307 = vmatpush.msra.mxu0 0.0
        %308 = vmatpush.msra.mxu0 0.0
        %309 = vmatpush.msra.mxu0 0.0
        %310 = vmatpush.msra.mxu0 %v244
        %311 = vmatpush.msra.mxu0 %v243
        %312 = vmatpush.msra.mxu0 %v242
        %313 = vmatpush.msra.mxu0 %v241
        %314 = vmatmul.f32.gmra.mxu0 %v251
        %v315 = vpop.f32.mrf.mxu0
        %v316 = vadd.f32 %v247, %v315
        %317 = vmatmul.f32.gmra.mxu0 %v254
        %v318 = vpop.f32.mrf.mxu0
        %v319 = vadd.f32 %v247, %v318
        %320 = vmatmul.f32.gmra.mxu0 %v257
        %v321 = vpop.f32.mrf.mxu0
        %v322 = vadd.f32 %v247, %v321
        %323 = vmatmul.f32.gmra.mxu0 %v260
        %v324 = vpop.f32.mrf.mxu0
        %v325 = vadd.f32 %v247, %v324
        %326 = vmatmul.f32.gmra.mxu0 %v263
        %v327 = vpop.f32.mrf.mxu0
        %v328 = vadd.f32 %v247, %v327
        %329 = vmatmul.f32.gmra.mxu0 %v266
        %v330 = vpop.f32.mrf.mxu0
        %v331 = vadd.f32 %v247, %v330
        %332 = vmatmul.f32.gmra.mxu0 %v269
        %v333 = vpop.f32.mrf.mxu0
        %v334 = vadd.f32 %v247, %v333
        %335 = vmatmul.f32.gmra.mxu0 %v272
        %v336 = vpop.f32.mrf.mxu0
        %v337 = vadd.f32 %v247, %v336
        %338 = vmatmul.f32.gmra.mxu0 %v275
        %v339 = vpop.f32.mrf.mxu0
        %v340 = vadd.f32 %v247, %v339
        %341 = vmatmul.f32.gmra.mxu0 %v278
        %v342 = vpop.f32.mrf.mxu0
        %v343 = vadd.f32 %v247, %v342
        %344 = vmatmul.f32.gmra.mxu0 %v281
        %v345 = vpop.f32.mrf.mxu0
        %v346 = vadd.f32 %v247, %v345
        %347 = vmatmul.f32.gmra.mxu0 %v284
        %v348 = vpop.f32.mrf.mxu0
        %v349 = vadd.f32 %v247, %v348
        %350 = vmatmul.f32.gmra.mxu0 %v287
        %v351 = vpop.f32.mrf.mxu0
        %v352 = vadd.f32 %v247, %v351
        %353 = vmatmul.f32.gmra.mxu0 %v290
        %v354 = vpop.f32.mrf.mxu0
        %v355 = vadd.f32 %v247, %v354
        %356 = vmatmul.f32.gmra.mxu0 %v293
        %v357 = vpop.f32.mrf.mxu0
        %v358 = vadd.f32 %v247, %v357
        %359 = vmatmul.f32.gmra.mxu0 %v296
        %v360 = vpop.f32.mrf.mxu0
        %v361 = vadd.f32 %v247, %v360
        %362 = vdwg.mxu0
        %v363 = vmax.f32 %v316, 0.0
        %v364 = vmax.f32 %v319, 0.0
        %v365 = vmax.f32 %v322, 0.0
        %v366 = vmax.f32 %v325, 0.0
        %v367 = vmax.f32 %v328, 0.0
        %v368 = vmax.f32 %v331, 0.0
        %v369 = vmax.f32 %v334, 0.0
        %v370 = vmax.f32 %v337, 0.0
        %v371 = vmax.f32 %v340, 0.0
        %v372 = vmax.f32 %v343, 0.0
        %v373 = vmax.f32 %v346, 0.0
        %v374 = vmax.f32 %v349, 0.0
        %v375 = vmax.f32 %v352, 0.0
        %v376 = vmax.f32 %v355, 0.0
        %v377 = vmax.f32 %v358, 0.0
        %v378 = vmax.f32 %v361, 0.0
        %v379 = vld [vmem:[%s3] sm:$0x1]
        %s380 = sld [smem:[#allocation2]]
        %v381 = vstv %s380
        %vm382 = vcmask 408576
        %v384 = vsel %vm382, %v379, 0
        %v387 = vsel %vm382, %v363, 0
        %v390 = vsel %vm382, %v364, 0
        %v393 = vsel %vm382, %v365, 0
        %v396 = vsel %vm382, %v366, 0
        %v399 = vsel %vm382, %v367, 0
        %v402 = vsel %vm382, %v368, 0
        %v405 = vsel %vm382, %v369, 0
        %v408 = vsel %vm382, %v370, 0
        %v411 = vsel %vm382, %v371, 0
        %v414 = vsel %vm382, %v372, 0
        %v417 = vsel %vm382, %v373, 0
        %v420 = vsel %vm382, %v374, 0
        %v423 = vsel %vm382, %v375, 0
        %v426 = vsel %vm382, %v376, 0
        %v429 = vsel %vm382, %v377, 0
        %v432 = vsel %vm382, %v378, 0
        %434 = vmatpush.xpose.msra.mxu0 %v432
        %435 = vmatpush.xpose.msra.mxu0 %v429
        %436 = vmatpush.xpose.msra.mxu0 %v426
        %437 = vmatpush.xpose.msra.mxu0 %v423
        %438 = vmatpush.xpose.msra.mxu0 %v420
        %439 = vmatpush.xpose.msra.mxu0 %v417
        %440 = vmatpush.xpose.msra.mxu0 %v414
        %441 = vmatpush.xpose.msra.mxu0 %v411
        %442 = vmatpush.xpose.msra.mxu0 %v408
        %443 = vmatpush.xpose.msra.mxu0 %v405
        %444 = vmatpush.xpose.msra.mxu0 %v402
        %445 = vmatpush.xpose.msra.mxu0 %v399
        %446 = vmatpush.xpose.msra.mxu0 %v396
        %447 = vmatpush.xpose.msra.mxu0 %v393
        %448 = vmatpush.xpose.msra.mxu0 %v390
        %449 = vmatpush.xpose.msra.mxu0 %v387
        %450 = vmatmul.f32.gmra.mxu0 %v384
        %v451 = vpop.f32.mrf.mxu0
        %v452 = vadd.f32 %v381, %v451
        %453 = vdwg.mxu0
        %454 = vst [vmem:[%s218] sm:$0x1] %v452
        %s455 = sand.u32 %s138, 1
        %s456 = scalar_lea.sflag [#allocation4], %s455
        %s457 = sand.u32 %s138, 1
        %s458 = scalar_lea.vmem [#allocation3], %s457
        // Predicated region
        $region41: #{tpu_custom_call.1} parent=39 // pred_check
          %p459 = pneg %p148
        $region42: #{tpu_custom_call.1} parent=39 // pred_check_branch
          %461 = sbr.rel (%p459) target = $region44
        $region43: #{tpu_custom_call.1} parent=39 // pred_region
          %463 = vsyncadd %s456, 0
          %s464 = scalar_lea.hbm %s5, %s20
          %s466 = sshll.u32 %s458, 4
          %s467 = int_to_ptr.vmem [resolvable:$true] %s466
          %s468 = sshll.u32 %s464, 4
          %s469 = int_to_ptr.hbm [resolvable:$true] %s468
          %471 = dma.vmem_to_hbm [thread:$0]  %s467, 16, %s469, %s456
        $region44: #{tpu_custom_call.1} parent=39 // pred_fallthru
          _
      $region40: #{tpu_custom_call.1} parent=5 // pred_fallthru
        _
      %p472 = scmp.le.s32.totalorder 2, %s15
      // Predicated region
      $region45: #{tpu_custom_call.1} parent=5 // pred_check
        %p473 = pneg %p472
      $region46: #{tpu_custom_call.1} parent=5 // pred_check_branch
        %475 = sbr.rel (%p473) target = $region48
      $region47: #{tpu_custom_call.1} parent=5 // pred_region
        %s476 = ssub.s32 %s15, 2
        // Predicated region
        $region49: #{tpu_custom_call.1} parent=47 // pred_check
          %p477 = pneg %p154
        $region50: #{tpu_custom_call.1} parent=47 // pred_check_branch
          %479 = sbr.rel (%p477) target = $region52
        $region51: #{tpu_custom_call.1} parent=47 // pred_region
          %s480 = sand.u32 %s139, 1
          %s481 = scalar_lea.sflag [#allocation4], %s480
          %s482 = sand.u32 %s139, 1
          %s483 = scalar_lea.vmem [#allocation3], %s482
          %485 = dma.done %s481, 16
        $region52: #{tpu_custom_call.1} parent=47 // pred_fallthru
          _
      $region48: #{tpu_custom_call.1} parent=5 // pred_fallthru
        _
    $region6: #{tpu_custom_call.1} parent=1 // loop_footer
      %s19 = sadd.s32 1, %s15
    $region7: #{tpu_custom_call.1} parent=1 // loop_footer_branch
      %14 = sbr.rel target = $region3
    $region8: #{tpu_custom_call.1} parent=1 // loop_exit
      _
    %486 = vsyncpa [#allocation4], 1
    %s487 = scalar_lea.sflag [#allocation4], 1
    %488 = vsyncpa %s487, 1

</llo_original>
